<compile_context>
chip_gen: v7x
topology: tpu7x:2x2x1
jax: 0.10.0
libtpu: 0.0.40
codegen_flags: <defaults>
</compile_context>

<pallas_src>
import jax
import jax.numpy as jnp
from jax.experimental import pallas as pl
from jax.experimental.pallas import tpu as pltpu


def _round_up(n, m):
    return ((n + m - 1) // m) * m


def _ff_kernel(xt_ref, w1t_ref, b1_ref, w2_ref, b2_ref, out_ref):
    # xt_ref : (in_dim, tb)  f32  x transposed, batch on lanes (lane-dense)
    # w1t_ref: (Hp, in_dim)  f32  W1 transposed, hidden on sublanes
    # b1_ref : (Hp, 1)       f32  bias column
    # w2_ref : (Hp, 1)       f32  W2 column
    # b2_ref : (1, 1)        f32  scalar bias in SMEM
    # out_ref: (1, tb)       f32  lane-dense output
    in_dim = xt_ref.shape[0]
    tb = out_ref.shape[1]
    SB = 128                      # batch (lane) chunk per fused pass
    n_chunks = tb // SB           # static (tb is a multiple of 128)

    b2 = b2_ref[0, 0]             # scalar from SMEM, hoisted out of the loop

    # Real loop (scf.for), not a Python unroll, so live ranges stay bounded at
    # one (Hp, SB) chunk regardless of tb.
    @pl.loop(0, n_chunks)
    def _(c):
        start = pl.multiple_of(c * SB, SB)
        xc = xt_ref[:, pl.ds(start, SB)]                  # (in_dim, SB) lane-dense

        # Layer 1 on the VPU, bias folded into the init. K=6 is unrolled as
        # outer-product mul-adds (hidden on sublanes x batch on lanes); no
        # MXU pass with K padded 6 -> 128.
        h = b1_ref[...] + w1t_ref[:, 0:1] * xc[0:1, :]    # (Hp, SB)
        for k in range(1, in_dim):                        # tiny static unroll
            h = h + w1t_ref[:, k:k + 1] * xc[k:k + 1, :]
        h = jnp.maximum(h, 0.0)                           # ReLU

        # Layer 2: weighted reduce over the hidden (sublane) axis. Mostly VPU
        # vreg adds + one in-vreg sublane reduce; result is already lane-dense
        # (1, SB), so the store is an unmasked full-lane write.
        o = jnp.sum(h * w2_ref[...], axis=0, keepdims=True)
        out_ref[:, pl.ds(start, SB)] = o + b2


def action_conditioned_ff(x, w1, b1, w2, b2, *, block_b=1024):
    """x: (B, input_size) f32; w1: (in, hidden); b1: (hidden,);
    w2: (hidden, 1); b2: (1,). Returns (B, 1) f32."""
    B, in_dim = x.shape
    hidden = w1.shape[1]
    out_dim = w2.shape[1]
    assert out_dim == 1, "kernel is specialized for the module's output_size=1"

    # Pad hidden (180 -> 256). Zero padding is exact: padded W1 rows / b1 give
    # h=0, ReLU(0)=0, and the zero W2 entries contribute nothing.
    hp = _round_up(hidden, 128)
    if hp != hidden:
        w1 = jnp.pad(w1, ((0, 0), (0, hp - hidden)))
        b1 = jnp.pad(b1, (0, hp - hidden))
        w2 = jnp.pad(w2, ((0, hp - hidden), (0, 0)))

    w1t = w1.T                    # (hp, in_dim): hidden on sublanes
    b1_col = b1.reshape(hp, 1)
    w2_col = w2.reshape(hp, 1)
    b2_s = b2.reshape(1, 1)       # scalar bias -> SMEM

    # Batch padded to a lane multiple so every block is lane-dense. Guarantee
    # >=2 grid steps when splittable so v7x's two TensorCores both get work.
    bp_min = _round_up(max(B, 1), 128)
    tb = min(_round_up(block_b, 128), bp_min)
    if bp_min // tb < 2 and bp_min >= 2 * 128:
        tb = _round_up((bp_min + 1) // 2, 128)
    bp = _round_up(bp_min, tb)
    grid = (bp // tb,)

    # x transposed to (in_dim, B): lane-dense tiles and contiguous DMA rows.
    # (A production caller could supply x already transposed to skip this.)
    xt = jnp.pad(x.T, ((0, 0), (0, bp - B)))

    flops = 2 * B * in_dim * hidden + 2 * B * hidden * out_dim
    bytes_accessed = 4 * (B * (in_dim + out_dim)
                          + in_dim * hidden + hidden + hidden * out_dim + 1)

    out = pl.pallas_call(
        _ff_kernel,
        out_shape=jax.ShapeDtypeStruct((1, bp), jnp.float32),
        grid=grid,
        in_specs=[
            pl.BlockSpec((in_dim, tb), lambda i: (0, i)),       # x^T batch tile
            pl.BlockSpec((hp, in_dim), lambda i: (0, 0)),       # W1^T, VMEM-resident
            pl.BlockSpec((hp, 1), lambda i: (0, 0)),            # b1 column
            pl.BlockSpec((hp, 1), lambda i: (0, 0)),            # W2 column
            pl.BlockSpec(memory_space=pltpu.MemorySpace.SMEM),  # b2 scalar in SMEM
        ],
        out_specs=pl.BlockSpec((1, tb), lambda i: (0, i)),      # lane-dense output
        compiler_params=pltpu.CompilerParams(
            dimension_semantics=("parallel",)),
        cost_estimate=pl.CostEstimate(
            flops=flops, transcendentals=0, bytes_accessed=bytes_accessed),
    )(xt, w1t, b1_col, w2_col, b2_s)

    return out.reshape(-1)[:B].reshape(B, out_dim)


def init_params(key, input_size=6, hidden_size=180, output_size=1):
    # Deterministic init mimicking nn.Linear's uniform(-1/sqrt(fan_in), 1/sqrt(fan_in)).
    k1, k2, k3, k4 = jax.random.split(key, 4)
    lim1 = 1.0 / jnp.sqrt(jnp.float32(input_size))
    lim2 = 1.0 / jnp.sqrt(jnp.float32(hidden_size))
    w1 = jax.random.uniform(k1, (input_size, hidden_size), jnp.float32, -lim1, lim1)
    b1 = jax.random.uniform(k2, (hidden_size,), jnp.float32, -lim1, lim1)
    w2 = jax.random.uniform(k3, (hidden_size, output_size), jnp.float32, -lim2, lim2)
    b2 = jax.random.uniform(k4, (output_size,), jnp.float32, -lim2, lim2)
    return w1, b1, w2, b2


if __name__ == "__main__":
    key = jax.random.PRNGKey(0)
    kx, kp = jax.random.split(key)

    batch, input_size, hidden_size, output_size = 8, 6, 180, 1
    x = jax.random.normal(kx, (batch, input_size), jnp.float32)
    w1, b1, w2, b2 = init_params(kp, input_size, hidden_size, output_size)

    out = jax.block_until_ready(action_conditioned_ff(x, w1, b1, w2, b2))

    # Pure-JAX reference check (forward pass of Action_Conditioned_FF).
    ref = jnp.maximum(x @ w1 + b1, 0.0) @ w2 + b2
    assert out.shape == (batch, output_size)
    assert jnp.allclose(out, ref, atol=1e-5, rtol=1e-5)

    # Second check exercises the multi-tile grid + multi-chunk fused loop
    # (B=300 -> padded 512, 2 grid steps of 256 lanes, 2 chunks each).
    x2 = jax.random.normal(kx, (300, input_size), jnp.float32)
    out2 = jax.block_until_ready(action_conditioned_ff(x2, w1, b1, w2, b2))
    ref2 = jnp.maximum(x2 @ w1 + b1, 0.0) @ w2 + b2
    assert out2.shape == (300, output_size)
    assert jnp.allclose(out2, ref2, atol=1e-5, rtol=1e-5)

    print("KERNEL_OK")
</pallas_src>

<mosaic_0001>
module attributes {stable_mosaic.version = 11 : i64} {
  func.func @_ff_kernel(%arg0: i32, %arg1: memref<6x128xf32, #tpu.memory_space<vmem>>, %arg2: memref<256x6xf32, #tpu.memory_space<vmem>>, %arg3: memref<256x1xf32, #tpu.memory_space<vmem>>, %arg4: memref<256x1xf32, #tpu.memory_space<vmem>>, %arg5: memref<1x1xf32, #tpu.memory_space<smem>>, %arg6: memref<1x128xf32, #tpu.memory_space<vmem>>) attributes {dimension_semantics = [#tpu.dimension_semantics<parallel>], iteration_bounds = array<i64: 1>, scalar_prefetch = 0 : i64, scratch_operands = 0 : i64, tpu.core_type = #tpu.core_type<tc>, window_params = [{transform_indices = @transform_0, window_bounds = array<i64: 6, 128>}, {pipeline_mode = #tpu.pipeline_mode<synchronous>, transform_indices = @transform_1, window_bounds = array<i64: 256, 6>}, {pipeline_mode = #tpu.pipeline_mode<synchronous>, transform_indices = @transform_2, window_bounds = array<i64: 256, 1>}, {pipeline_mode = #tpu.pipeline_mode<synchronous>, transform_indices = @transform_3, window_bounds = array<i64: 256, 1>}, {transform_indices = @transform_4, window_bounds = array<i64: 1, 1>}, {transform_indices = @transform_5, window_bounds = array<i64: 1, 128>}]} {
    %c0 = arith.constant 0 : index
    %c0_0 = arith.constant 0 : index
    %0 = memref.load %arg5[%c0, %c0_0] : memref<1x1xf32, #tpu.memory_space<smem>>
    %c0_i32 = arith.constant 0 : i32
    %c1_i32 = arith.constant 1 : i32
    %1 = arith.muli %c0_i32, %c1_i32 : i32
    %c0_i32_1 = arith.constant 0 : i32
    %2 = arith.addi %c0_i32_1, %1 : i32
    %c128_i32 = arith.constant 128 : i32
    %3 = arith.muli %2, %c128_i32 : i32
    %4 = tpu.assume_multiple %3, 128 : i32
    %c0_2 = arith.constant 0 : index
    %5 = arith.index_cast %4 : i32 to index
    %6 = vector.load %arg1[%c0_2, %5] : memref<6x128xf32, #tpu.memory_space<vmem>>, vector<6x128xf32>
    %c0_3 = arith.constant 0 : index
    %c0_4 = arith.constant 0 : index
    %7 = vector.load %arg3[%c0_3, %c0_4] : memref<256x1xf32, #tpu.memory_space<vmem>>, vector<256x1xf32>
    %c0_5 = arith.constant 0 : index
    %c0_6 = arith.constant 0 : index
    %8 = vector.load %arg2[%c0_5, %c0_6] : memref<256x6xf32, #tpu.memory_space<vmem>>, vector<256x1xf32>
    %9 = vector.extract_strided_slice %6 {offsets = [0, 0], sizes = [1, 128], strides = [1, 1]} : vector<6x128xf32> to vector<1x128xf32>
    %10 = vector.broadcast %8 : vector<256x1xf32> to vector<256x128xf32>
    %11 = vector.broadcast %9 : vector<1x128xf32> to vector<256x128xf32>
    %12 = arith.mulf %10, %11 : vector<256x128xf32>
    %13 = vector.broadcast %7 : vector<256x1xf32> to vector<256x128xf32>
    %14 = arith.addf %13, %12 : vector<256x128xf32>
    %c0_7 = arith.constant 0 : index
    %c1 = arith.constant 1 : index
    %15 = vector.load %arg2[%c0_7, %c1] : memref<256x6xf32, #tpu.memory_space<vmem>>, vector<256x1xf32>
    %16 = vector.extract_strided_slice %6 {offsets = [1, 0], sizes = [1, 128], strides = [1, 1]} : vector<6x128xf32> to vector<1x128xf32>
    %17 = vector.broadcast %15 : vector<256x1xf32> to vector<256x128xf32>
    %18 = vector.broadcast %16 : vector<1x128xf32> to vector<256x128xf32>
    %19 = arith.mulf %17, %18 : vector<256x128xf32>
    %20 = arith.addf %14, %19 : vector<256x128xf32>
    %c0_8 = arith.constant 0 : index
    %c2 = arith.constant 2 : index
    %21 = vector.load %arg2[%c0_8, %c2] : memref<256x6xf32, #tpu.memory_space<vmem>>, vector<256x1xf32>
    %22 = vector.extract_strided_slice %6 {offsets = [2, 0], sizes = [1, 128], strides = [1, 1]} : vector<6x128xf32> to vector<1x128xf32>
    %23 = vector.broadcast %21 : vector<256x1xf32> to vector<256x128xf32>
    %24 = vector.broadcast %22 : vector<1x128xf32> to vector<256x128xf32>
    %25 = arith.mulf %23, %24 : vector<256x128xf32>
    %26 = arith.addf %20, %25 : vector<256x128xf32>
    %c0_9 = arith.constant 0 : index
    %c3 = arith.constant 3 : index
    %27 = vector.load %arg2[%c0_9, %c3] : memref<256x6xf32, #tpu.memory_space<vmem>>, vector<256x1xf32>
    %28 = vector.extract_strided_slice %6 {offsets = [3, 0], sizes = [1, 128], strides = [1, 1]} : vector<6x128xf32> to vector<1x128xf32>
    %29 = vector.broadcast %27 : vector<256x1xf32> to vector<256x128xf32>
    %30 = vector.broadcast %28 : vector<1x128xf32> to vector<256x128xf32>
    %31 = arith.mulf %29, %30 : vector<256x128xf32>
    %32 = arith.addf %26, %31 : vector<256x128xf32>
    %c0_10 = arith.constant 0 : index
    %c4 = arith.constant 4 : index
    %33 = vector.load %arg2[%c0_10, %c4] : memref<256x6xf32, #tpu.memory_space<vmem>>, vector<256x1xf32>
    %34 = vector.extract_strided_slice %6 {offsets = [4, 0], sizes = [1, 128], strides = [1, 1]} : vector<6x128xf32> to vector<1x128xf32>
    %35 = vector.broadcast %33 : vector<256x1xf32> to vector<256x128xf32>
    %36 = vector.broadcast %34 : vector<1x128xf32> to vector<256x128xf32>
    %37 = arith.mulf %35, %36 : vector<256x128xf32>
    %38 = arith.addf %32, %37 : vector<256x128xf32>
    %c0_11 = arith.constant 0 : index
    %c5 = arith.constant 5 : index
    %39 = vector.load %arg2[%c0_11, %c5] : memref<256x6xf32, #tpu.memory_space<vmem>>, vector<256x1xf32>
    %40 = vector.extract_strided_slice %6 {offsets = [5, 0], sizes = [1, 128], strides = [1, 1]} : vector<6x128xf32> to vector<1x128xf32>
    %41 = vector.broadcast %39 : vector<256x1xf32> to vector<256x128xf32>
    %42 = vector.broadcast %40 : vector<1x128xf32> to vector<256x128xf32>
    %43 = arith.mulf %41, %42 : vector<256x128xf32>
    %44 = arith.addf %38, %43 : vector<256x128xf32>
    %cst = arith.constant 0.000000e+00 : f32
    %45 = vector.broadcast %cst : f32 to vector<256x128xf32>
    %46 = arith.maximumf %44, %45 : vector<256x128xf32>
    %c0_12 = arith.constant 0 : index
    %c0_13 = arith.constant 0 : index
    %47 = vector.load %arg4[%c0_12, %c0_13] : memref<256x1xf32, #tpu.memory_space<vmem>>, vector<256x1xf32>
    %48 = vector.broadcast %47 : vector<256x1xf32> to vector<256x128xf32>
    %49 = arith.mulf %46, %48 : vector<256x128xf32>
    %cst_14 = arith.constant dense<0.000000e+00> : vector<128xf32>
    %50 = vector.multi_reduction <add>, %49, %cst_14 [0] : vector<256x128xf32> to vector<128xf32>
    %51 = vector.shape_cast %50 : vector<128xf32> to vector<1x128xf32>
    %52 = vector.broadcast %0 : f32 to vector<1x128xf32>
    %53 = arith.addf %51, %52 : vector<1x128xf32>
    %c0_15 = arith.constant 0 : index
    %54 = arith.index_cast %4 : i32 to index
    %55 = vector.load %arg6[%c0_15, %54] : memref<1x128xf32, #tpu.memory_space<vmem>>, vector<1x128xf32>
    tpu.vector_store %arg6[%c0_15, %54], %53 {strides = array<i32>} : memref<1x128xf32, #tpu.memory_space<vmem>>, vector<1x128xf32>,
    %c1_i32_16 = arith.constant 1 : i32
    return
  }
  func.func @transform_0(%arg0: i32) -> (i32, i32) {
    %c0_i32 = arith.constant 0 : i32
    %c0_i32_0 = arith.constant 0 : i32
    return %c0_i32, %arg0 : i32, i32
  }
  func.func @transform_1(%arg0: i32) -> (i32, i32) {
    %c0_i32 = arith.constant 0 : i32
    %c0_i32_0 = arith.constant 0 : i32
    %c0_i32_1 = arith.constant 0 : i32
    return %c0_i32, %c0_i32_0 : i32, i32
  }
  func.func @transform_2(%arg0: i32) -> (i32, i32) {
    %c0_i32 = arith.constant 0 : i32
    %c0_i32_0 = arith.constant 0 : i32
    %c0_i32_1 = arith.constant 0 : i32
    return %c0_i32, %c0_i32_0 : i32, i32
  }
  func.func @transform_3(%arg0: i32) -> (i32, i32) {
    %c0_i32 = arith.constant 0 : i32
    %c0_i32_0 = arith.constant 0 : i32
    %c0_i32_1 = arith.constant 0 : i32
    return %c0_i32, %c0_i32_0 : i32, i32
  }
  func.func @transform_4(%arg0: i32) -> (i32, i32) {
    %c0_i32 = arith.constant 0 : i32
    %c0_i32_0 = arith.constant 0 : i32
    %c0_i32_1 = arith.constant 0 : i32
    return %c0_i32, %c0_i32_0 : i32, i32
  }
  func.func @transform_5(%arg0: i32) -> (i32, i32) {
    %c0_i32 = arith.constant 0 : i32
    %c0_i32_0 = arith.constant 0 : i32
    return %c0_i32, %arg0 : i32, i32
  }
}

</mosaic_0001>

<llo_original>
// kernel: tpu_custom_call.1
$region0: #{tpu_custom_call.1}
  #allocation0 [shape = 'u32[]', space=smem, size = 0x4, offset = 0x4, fixed_abs, tag = 'smem constant byte address 0x4 - core index']
  #allocation1 [shape = 'u32[144,128]{1,0:T(1,128)}', space=vmem, size = 0x12000, scoped, tag = 'internal scratch']
  #allocation2 [shape = 'f32[1,1]{1,0:T(1,128)S(6)}', space=smem, size = 0x200, scoped, tag = 'scoped memory for tpu_custom_call.1']
  %s0 = inlined_call_operand.vmem [shape: f32[6,128], index: 0, kind: input, shape index: {}]
  %s1 = inlined_call_operand.vmem [shape: f32[256,6], index: 1, kind: input, shape index: {}]
  %s2 = inlined_call_operand.vmem [shape: f32[256,1], index: 2, kind: input, shape index: {}]
  %s3 = inlined_call_operand.vmem [shape: f32[256,1], index: 3, kind: input, shape index: {}]
  %s4 = inlined_call_operand.<no memory space> [shape: f32[1,1], index: 4, kind: input, shape index: {}]
  %s5 = inlined_call_operand.hbm [shape: f32[1,128], index: 5, kind: output, shape index: {}]
  %s6 = sld [smem:[#allocation0]]
  $region30: #{tpu_custom_call.1} parent=0
    _
  %s8 = ssub.s32 1, %s6
  %s9 = scalar_select 0, %s8, %s6
  %10 = sst [smem:[#allocation2]] %s4
  $region1: #{tpu_custom_call.1} parent=0
    #allocation3 [shape = 'u8[512]{0}', space=vmem, size = 0x400, scoped, tag = 'output window, operand 0, single buffered']
    #allocation4 [shape = 's32[1]{0}', space=sflag, size = 0x4, scoped, tag = 'scoped memory for tpu_custom_call.1']
    %11 = vsyncpa [#allocation4], 0
    // Predicated region
    $region2: #{tpu_custom_call.1} parent=1 // pred_check
      _
    $region3: #{tpu_custom_call.1} parent=1 // pred_check_branch
      %13 = sbr.rel (0) target = $region5
    $region4: #{tpu_custom_call.1} parent=1 // pred_region
      _
    $region5: #{tpu_custom_call.1} parent=1 // pred_fallthru
      _
    // Predicated region
    $region6: #{tpu_custom_call.1} parent=1 // pred_check
      _
    $region7: #{tpu_custom_call.1} parent=1 // pred_check_branch
      %15 = sbr.rel (0) target = $region9
    $region8: #{tpu_custom_call.1} parent=1 // pred_region
      _
    $region9: #{tpu_custom_call.1} parent=1 // pred_fallthru
      _
    // Predicated region
    $region10: #{tpu_custom_call.1} parent=1 // pred_check
      _
    $region11: #{tpu_custom_call.1} parent=1 // pred_check_branch
      %17 = sbr.rel (0) target = $region13
    $region12: #{tpu_custom_call.1} parent=1 // pred_region
      _
    $region13: #{tpu_custom_call.1} parent=1 // pred_fallthru
      _
    // Predicated region
    $region14: #{tpu_custom_call.1} parent=1 // pred_check
      _
    $region15: #{tpu_custom_call.1} parent=1 // pred_check_branch
      %19 = sbr.rel (0) target = $region17
    $region16: #{tpu_custom_call.1} parent=1 // pred_region
      _
    $region17: #{tpu_custom_call.1} parent=1 // pred_fallthru
      _
    // Predicated region
    $region18: #{tpu_custom_call.1} parent=1 // pred_check
      _
    $region19: #{tpu_custom_call.1} parent=1 // pred_check_branch
      %21 = sbr.rel (0) target = $region21
    $region20: #{tpu_custom_call.1} parent=1 // pred_region
      _
    $region21: #{tpu_custom_call.1} parent=1 // pred_fallthru
      _
    %s22 = sld [smem:[#allocation2]]
    %v23 = vld [vmem:[%s0] sm:$0x3f]
    %v24 = vld [vmem:[%s2] sm:$0xff]
    %v25 = vld [vmem:[%s2 + $0x8] sm:$0xff]
    %v26 = vld [vmem:[%s2 + $0x10] sm:$0xff]
    %v27 = vld [vmem:[%s2 + $0x18] sm:$0xff]
    %v28 = vld [vmem:[%s2 + $0x20] sm:$0xff]
    %v29 = vld [vmem:[%s2 + $0x28] sm:$0xff]
    %v30 = vld [vmem:[%s2 + $0x30] sm:$0xff]
    %v31 = vld [vmem:[%s2 + $0x38] sm:$0xff]
    %v32 = vld [vmem:[%s2 + $0x40] sm:$0xff]
    %v33 = vld [vmem:[%s2 + $0x48] sm:$0xff]
    %v34 = vld [vmem:[%s2 + $0x50] sm:$0xff]
    %v35 = vld [vmem:[%s2 + $0x58] sm:$0xff]
    %v36 = vld [vmem:[%s2 + $0x60] sm:$0xff]
    %v37 = vld [vmem:[%s2 + $0x68] sm:$0xff]
    %v38 = vld [vmem:[%s2 + $0x70] sm:$0xff]
    %v39 = vld [vmem:[%s2 + $0x78] sm:$0xff]
    %v40 = vld [vmem:[%s2 + $0x80] sm:$0xff]
    %v41 = vld [vmem:[%s2 + $0x88] sm:$0xff]
    %v42 = vld [vmem:[%s2 + $0x90] sm:$0xff]
    %v43 = vld [vmem:[%s2 + $0x98] sm:$0xff]
    %v44 = vld [vmem:[%s2 + $0xa0] sm:$0xff]
    %v45 = vld [vmem:[%s2 + $0xa8] sm:$0xff]
    %v46 = vld [vmem:[%s2 + $0xb0] sm:$0xff]
    %v47 = vld [vmem:[%s2 + $0xb8] sm:$0xff]
    %v48 = vld [vmem:[%s2 + $0xc0] sm:$0xff]
    %v49 = vld [vmem:[%s2 + $0xc8] sm:$0xff]
    %v50 = vld [vmem:[%s2 + $0xd0] sm:$0xff]
    %v51 = vld [vmem:[%s2 + $0xd8] sm:$0xff]
    %v52 = vld [vmem:[%s2 + $0xe0] sm:$0xff]
    %v53 = vld [vmem:[%s2 + $0xe8] sm:$0xff]
    %v54 = vld [vmem:[%s2 + $0xf0] sm:$0xff]
    %v55 = vld [vmem:[%s2 + $0xf8] sm:$0xff]
    %v56 = vld [vmem:[%s1] sm:$0xff]
    %v57 = vld [vmem:[%s1 + $0x8] sm:$0xff]
    %v58 = vld [vmem:[%s1 + $0x10] sm:$0xff]
    %v59 = vld [vmem:[%s1 + $0x18] sm:$0xff]
    %v60 = vld [vmem:[%s1 + $0x20] sm:$0xff]
    %v61 = vld [vmem:[%s1 + $0x28] sm:$0xff]
    %v62 = vld [vmem:[%s1 + $0x30] sm:$0xff]
    %v63 = vld [vmem:[%s1 + $0x38] sm:$0xff]
    %v64 = vld [vmem:[%s1 + $0x40] sm:$0xff]
    %v65 = vld [vmem:[%s1 + $0x48] sm:$0xff]
    %v66 = vld [vmem:[%s1 + $0x50] sm:$0xff]
    %v67 = vld [vmem:[%s1 + $0x58] sm:$0xff]
    %v68 = vld [vmem:[%s1 + $0x60] sm:$0xff]
    %v69 = vld [vmem:[%s1 + $0x68] sm:$0xff]
    %v70 = vld [vmem:[%s1 + $0x70] sm:$0xff]
    %v71 = vld [vmem:[%s1 + $0x78] sm:$0xff]
    %v72 = vld [vmem:[%s1 + $0x80] sm:$0xff]
    %v73 = vld [vmem:[%s1 + $0x88] sm:$0xff]
    %v74 = vld [vmem:[%s1 + $0x90] sm:$0xff]
    %v75 = vld [vmem:[%s1 + $0x98] sm:$0xff]
    %v76 = vld [vmem:[%s1 + $0xa0] sm:$0xff]
    %v77 = vld [vmem:[%s1 + $0xa8] sm:$0xff]
    %v78 = vld [vmem:[%s1 + $0xb0] sm:$0xff]
    %v79 = vld [vmem:[%s1 + $0xb8] sm:$0xff]
    %v80 = vld [vmem:[%s1 + $0xc0] sm:$0xff]
    %v81 = vld [vmem:[%s1 + $0xc8] sm:$0xff]
    %v82 = vld [vmem:[%s1 + $0xd0] sm:$0xff]
    %v83 = vld [vmem:[%s1 + $0xd8] sm:$0xff]
    %v84 = vld [vmem:[%s1 + $0xe0] sm:$0xff]
    %v85 = vld [vmem:[%s1 + $0xe8] sm:$0xff]
    %v86 = vld [vmem:[%s1 + $0xf0] sm:$0xff]
    %v87 = vld [vmem:[%s1 + $0xf8] sm:$0xff]
    %89 = vset.pattern.permute.xlu0 0
    %90 = vperm.xlu0 %89, %v56
    %v91 = vpop.permute.xlu0 %90
    %94 = vset.pattern.permute.xlu0 0
    %95 = vperm.xlu0 %94, %v57
    %v96 = vpop.permute.xlu0 %95
    %99 = vset.pattern.permute.xlu0 0
    %100 = vperm.xlu0 %99, %v58
    %v101 = vpop.permute.xlu0 %100
    %104 = vset.pattern.permute.xlu0 0
    %105 = vperm.xlu0 %104, %v59
    %v106 = vpop.permute.xlu0 %105
    %109 = vset.pattern.permute.xlu0 0
    %110 = vperm.xlu0 %109, %v60
    %v111 = vpop.permute.xlu0 %110
    %114 = vset.pattern.permute.xlu0 0
    %115 = vperm.xlu0 %114, %v61
    %v116 = vpop.permute.xlu0 %115
    %119 = vset.pattern.permute.xlu0 0
    %120 = vperm.xlu0 %119, %v62
    %v121 = vpop.permute.xlu0 %120
    %124 = vset.pattern.permute.xlu0 0
    %125 = vperm.xlu0 %124, %v63
    %v126 = vpop.permute.xlu0 %125
    %129 = vset.pattern.permute.xlu0 0
    %130 = vperm.xlu0 %129, %v64
    %v131 = vpop.permute.xlu0 %130
    %134 = vset.pattern.permute.xlu0 0
    %135 = vperm.xlu0 %134, %v65
    %v136 = vpop.permute.xlu0 %135
    %139 = vset.pattern.permute.xlu0 0
    %140 = vperm.xlu0 %139, %v66
    %v141 = vpop.permute.xlu0 %140
    %144 = vset.pattern.permute.xlu0 0
    %145 = vperm.xlu0 %144, %v67
    %v146 = vpop.permute.xlu0 %145
    %149 = vset.pattern.permute.xlu0 0
    %150 = vperm.xlu0 %149, %v68
    %v151 = vpop.permute.xlu0 %150
    %154 = vset.pattern.permute.xlu0 0
    %155 = vperm.xlu0 %154, %v69
    %v156 = vpop.permute.xlu0 %155
    %159 = vset.pattern.permute.xlu0 0
    %160 = vperm.xlu0 %159, %v70
    %v161 = vpop.permute.xlu0 %160
    %164 = vset.pattern.permute.xlu0 0
    %165 = vperm.xlu0 %164, %v71
    %v166 = vpop.permute.xlu0 %165
    %169 = vset.pattern.permute.xlu0 0
    %170 = vperm.xlu0 %169, %v72
    %v171 = vpop.permute.xlu0 %170
    %174 = vset.pattern.permute.xlu0 0
    %175 = vperm.xlu0 %174, %v73
    %v176 = vpop.permute.xlu0 %175
    %179 = vset.pattern.permute.xlu0 0
    %180 = vperm.xlu0 %179, %v74
    %v181 = vpop.permute.xlu0 %180
    %184 = vset.pattern.permute.xlu0 0
    %185 = vperm.xlu0 %184, %v75
    %v186 = vpop.permute.xlu0 %185
    %189 = vset.pattern.permute.xlu0 0
    %190 = vperm.xlu0 %189, %v76
    %v191 = vpop.permute.xlu0 %190
    %194 = vset.pattern.permute.xlu0 0
    %195 = vperm.xlu0 %194, %v77
    %v196 = vpop.permute.xlu0 %195
    %199 = vset.pattern.permute.xlu0 0
    %200 = vperm.xlu0 %199, %v78
    %v201 = vpop.permute.xlu0 %200
    %204 = vset.pattern.permute.xlu0 0
    %205 = vperm.xlu0 %204, %v79
    %v206 = vpop.permute.xlu0 %205
    %209 = vset.pattern.permute.xlu0 0
    %210 = vperm.xlu0 %209, %v80
    %v211 = vpop.permute.xlu0 %210
    %214 = vset.pattern.permute.xlu0 0
    %215 = vperm.xlu0 %214, %v81
    %v216 = vpop.permute.xlu0 %215
    %219 = vset.pattern.permute.xlu0 0
    %220 = vperm.xlu0 %219, %v82
    %v221 = vpop.permute.xlu0 %220
    %224 = vset.pattern.permute.xlu0 0
    %225 = vperm.xlu0 %224, %v83
    %v226 = vpop.permute.xlu0 %225
    %229 = vset.pattern.permute.xlu0 0
    %230 = vperm.xlu0 %229, %v84
    %v231 = vpop.permute.xlu0 %230
    %234 = vset.pattern.permute.xlu0 0
    %235 = vperm.xlu0 %234, %v85
    %v236 = vpop.permute.xlu0 %235
    %239 = vset.pattern.permute.xlu0 0
    %240 = vperm.xlu0 %239, %v86
    %v241 = vpop.permute.xlu0 %240
    %244 = vset.pattern.permute.xlu0 0
    %245 = vperm.xlu0 %244, %v87
    %v246 = vpop.permute.xlu0 %245
    %v248 = vlaneseq
    %v249 = vshrl.u32 %v248, 7
    %v250 = vsub.s32 0, %v249
    %v251 = vrot.slane %v23, %v250
    %v252 = vmul.f32 %v91, %v251
    %v253 = vmul.f32 %v96, %v251
    %v254 = vmul.f32 %v101, %v251
    %v255 = vmul.f32 %v106, %v251
    %v256 = vmul.f32 %v111, %v251
    %v257 = vmul.f32 %v116, %v251
    %v258 = vmul.f32 %v121, %v251
    %v259 = vmul.f32 %v126, %v251
    %v260 = vmul.f32 %v131, %v251
    %v261 = vmul.f32 %v136, %v251
    %v262 = vmul.f32 %v141, %v251
    %v263 = vmul.f32 %v146, %v251
    %v264 = vmul.f32 %v151, %v251
    %v265 = vmul.f32 %v156, %v251
    %v266 = vmul.f32 %v161, %v251
    %v267 = vmul.f32 %v166, %v251
    %v268 = vmul.f32 %v171, %v251
    %v269 = vmul.f32 %v176, %v251
    %v270 = vmul.f32 %v181, %v251
    %v271 = vmul.f32 %v186, %v251
    %v272 = vmul.f32 %v191, %v251
    %v273 = vmul.f32 %v196, %v251
    %v274 = vmul.f32 %v201, %v251
    %v275 = vmul.f32 %v206, %v251
    %v276 = vmul.f32 %v211, %v251
    %v277 = vmul.f32 %v216, %v251
    %v278 = vmul.f32 %v221, %v251
    %v279 = vmul.f32 %v226, %v251
    %v280 = vmul.f32 %v231, %v251
    %v281 = vmul.f32 %v236, %v251
    %v282 = vmul.f32 %v241, %v251
    %v283 = vmul.f32 %v246, %v251
    %285 = vset.pattern.permute.xlu0 0
    %286 = vperm.xlu0 %285, %v24
    %v287 = vpop.permute.xlu0 %286
    %290 = vset.pattern.permute.xlu0 0
    %291 = vperm.xlu0 %290, %v25
    %v292 = vpop.permute.xlu0 %291
    %295 = vset.pattern.permute.xlu0 0
    %296 = vperm.xlu0 %295, %v26
    %v297 = vpop.permute.xlu0 %296
    %300 = vset.pattern.permute.xlu0 0
    %301 = vperm.xlu0 %300, %v27
    %v302 = vpop.permute.xlu0 %301
    %305 = vset.pattern.permute.xlu0 0
    %306 = vperm.xlu0 %305, %v28
    %v307 = vpop.permute.xlu0 %306
    %310 = vset.pattern.permute.xlu0 0
    %311 = vperm.xlu0 %310, %v29
    %v312 = vpop.permute.xlu0 %311
    %315 = vset.pattern.permute.xlu0 0
    %316 = vperm.xlu0 %315, %v30
    %v317 = vpop.permute.xlu0 %316
    %320 = vset.pattern.permute.xlu0 0
    %321 = vperm.xlu0 %320, %v31
    %v322 = vpop.permute.xlu0 %321
    %325 = vset.pattern.permute.xlu0 0
    %326 = vperm.xlu0 %325, %v32
    %v327 = vpop.permute.xlu0 %326
    %330 = vset.pattern.permute.xlu0 0
    %331 = vperm.xlu0 %330, %v33
    %v332 = vpop.permute.xlu0 %331
    %335 = vset.pattern.permute.xlu0 0
    %336 = vperm.xlu0 %335, %v34
    %v337 = vpop.permute.xlu0 %336
    %340 = vset.pattern.permute.xlu0 0
    %341 = vperm.xlu0 %340, %v35
    %v342 = vpop.permute.xlu0 %341
    %345 = vset.pattern.permute.xlu0 0
    %346 = vperm.xlu0 %345, %v36
    %v347 = vpop.permute.xlu0 %346
    %350 = vset.pattern.permute.xlu0 0
    %351 = vperm.xlu0 %350, %v37
    %v352 = vpop.permute.xlu0 %351
    %355 = vset.pattern.permute.xlu0 0
    %356 = vperm.xlu0 %355, %v38
    %v357 = vpop.permute.xlu0 %356
    %360 = vset.pattern.permute.xlu0 0
    %361 = vperm.xlu0 %360, %v39
    %v362 = vpop.permute.xlu0 %361
    %365 = vset.pattern.permute.xlu0 0
    %366 = vperm.xlu0 %365, %v40
    %v367 = vpop.permute.xlu0 %366
    %370 = vset.pattern.permute.xlu0 0
    %371 = vperm.xlu0 %370, %v41
    %v372 = vpop.permute.xlu0 %371
    %375 = vset.pattern.permute.xlu0 0
    %376 = vperm.xlu0 %375, %v42
    %v377 = vpop.permute.xlu0 %376
    %380 = vset.pattern.permute.xlu0 0
    %381 = vperm.xlu0 %380, %v43
    %v382 = vpop.permute.xlu0 %381
    %385 = vset.pattern.permute.xlu0 0
    %386 = vperm.xlu0 %385, %v44
    %v387 = vpop.permute.xlu0 %386
    %390 = vset.pattern.permute.xlu0 0
    %391 = vperm.xlu0 %390, %v45
    %v392 = vpop.permute.xlu0 %391
    %395 = vset.pattern.permute.xlu0 0
    %396 = vperm.xlu0 %395, %v46
    %v397 = vpop.permute.xlu0 %396
    %400 = vset.pattern.permute.xlu0 0
    %401 = vperm.xlu0 %400, %v47
    %v402 = vpop.permute.xlu0 %401
    %405 = vset.pattern.permute.xlu0 0
    %406 = vperm.xlu0 %405, %v48
    %v407 = vpop.permute.xlu0 %406
    %410 = vset.pattern.permute.xlu0 0
    %411 = vperm.xlu0 %410, %v49
    %v412 = vpop.permute.xlu0 %411
    %415 = vset.pattern.permute.xlu0 0
    %416 = vperm.xlu0 %415, %v50
    %v417 = vpop.permute.xlu0 %416
    %420 = vset.pattern.permute.xlu0 0
    %421 = vperm.xlu0 %420, %v51
    %v422 = vpop.permute.xlu0 %421
    %425 = vset.pattern.permute.xlu0 0
    %426 = vperm.xlu0 %425, %v52
    %v427 = vpop.permute.xlu0 %426
    %430 = vset.pattern.permute.xlu0 0
    %431 = vperm.xlu0 %430, %v53
    %v432 = vpop.permute.xlu0 %431
    %435 = vset.pattern.permute.xlu0 0
    %436 = vperm.xlu0 %435, %v54
    %v437 = vpop.permute.xlu0 %436
    %440 = vset.pattern.permute.xlu0 0
    %441 = vperm.xlu0 %440, %v55
    %v442 = vpop.permute.xlu0 %441
    %v444 = vadd.f32 %v287, %v252
    %v445 = vadd.f32 %v292, %v253
    %v446 = vadd.f32 %v297, %v254
    %v447 = vadd.f32 %v302, %v255
    %v448 = vadd.f32 %v307, %v256
    %v449 = vadd.f32 %v312, %v257
    %v450 = vadd.f32 %v317, %v258
    %v451 = vadd.f32 %v322, %v259
    %v452 = vadd.f32 %v327, %v260
    %v453 = vadd.f32 %v332, %v261
    %v454 = vadd.f32 %v337, %v262
    %v455 = vadd.f32 %v342, %v263
    %v456 = vadd.f32 %v347, %v264
    %v457 = vadd.f32 %v352, %v265
    %v458 = vadd.f32 %v357, %v266
    %v459 = vadd.f32 %v362, %v267
    %v460 = vadd.f32 %v367, %v268
    %v461 = vadd.f32 %v372, %v269
    %v462 = vadd.f32 %v377, %v270
    %v463 = vadd.f32 %v382, %v271
    %v464 = vadd.f32 %v387, %v272
    %v465 = vadd.f32 %v392, %v273
    %v466 = vadd.f32 %v397, %v274
    %v467 = vadd.f32 %v402, %v275
    %v468 = vadd.f32 %v407, %v276
    %v469 = vadd.f32 %v412, %v277
    %v470 = vadd.f32 %v417, %v278
    %v471 = vadd.f32 %v422, %v279
    %v472 = vadd.f32 %v427, %v280
    %v473 = vadd.f32 %v432, %v281
    %v474 = vadd.f32 %v437, %v282
    %v475 = vadd.f32 %v442, %v283
    %476 = vset.pattern.permute.xlu0 1
    %477 = vperm.xlu0 %476, %v56
    %v478 = vpop.permute.xlu0 %477
    %480 = vset.pattern.permute.xlu0 1
    %481 = vperm.xlu0 %480, %v57
    %v482 = vpop.permute.xlu0 %481
    %484 = vset.pattern.permute.xlu0 1
    %485 = vperm.xlu0 %484, %v58
    %v486 = vpop.permute.xlu0 %485
    %488 = vset.pattern.permute.xlu0 1
    %489 = vperm.xlu0 %488, %v59
    %v490 = vpop.permute.xlu0 %489
    %492 = vset.pattern.permute.xlu0 1
    %493 = vperm.xlu0 %492, %v60
    %v494 = vpop.permute.xlu0 %493
    %496 = vset.pattern.permute.xlu0 1
    %497 = vperm.xlu0 %496, %v61
    %v498 = vpop.permute.xlu0 %497
    %500 = vset.pattern.permute.xlu0 1
    %501 = vperm.xlu0 %500, %v62
    %v502 = vpop.permute.xlu0 %501
    %504 = vset.pattern.permute.xlu0 1
    %505 = vperm.xlu0 %504, %v63
    %v506 = vpop.permute.xlu0 %505
    %508 = vset.pattern.permute.xlu0 1
    %509 = vperm.xlu0 %508, %v64
    %v510 = vpop.permute.xlu0 %509
    %512 = vset.pattern.permute.xlu0 1
    %513 = vperm.xlu0 %512, %v65
    %v514 = vpop.permute.xlu0 %513
    %516 = vset.pattern.permute.xlu0 1
    %517 = vperm.xlu0 %516, %v66
    %v518 = vpop.permute.xlu0 %517
    %520 = vset.pattern.permute.xlu0 1
    %521 = vperm.xlu0 %520, %v67
    %v522 = vpop.permute.xlu0 %521
    %524 = vset.pattern.permute.xlu0 1
    %525 = vperm.xlu0 %524, %v68
    %v526 = vpop.permute.xlu0 %525
    %528 = vset.pattern.permute.xlu0 1
    %529 = vperm.xlu0 %528, %v69
    %v530 = vpop.permute.xlu0 %529
    %532 = vset.pattern.permute.xlu0 1
    %533 = vperm.xlu0 %532, %v70
    %v534 = vpop.permute.xlu0 %533
    %536 = vset.pattern.permute.xlu0 1
    %537 = vperm.xlu0 %536, %v71
    %v538 = vpop.permute.xlu0 %537
    %540 = vset.pattern.permute.xlu0 1
    %541 = vperm.xlu0 %540, %v72
    %v542 = vpop.permute.xlu0 %541
    %544 = vset.pattern.permute.xlu0 1
    %545 = vperm.xlu0 %544, %v73
    %v546 = vpop.permute.xlu0 %545
    %548 = vset.pattern.permute.xlu0 1
    %549 = vperm.xlu0 %548, %v74
    %v550 = vpop.permute.xlu0 %549
    %552 = vset.pattern.permute.xlu0 1
    %553 = vperm.xlu0 %552, %v75
    %v554 = vpop.permute.xlu0 %553
    %556 = vset.pattern.permute.xlu0 1
    %557 = vperm.xlu0 %556, %v76
    %v558 = vpop.permute.xlu0 %557
    %560 = vset.pattern.permute.xlu0 1
    %561 = vperm.xlu0 %560, %v77
    %v562 = vpop.permute.xlu0 %561
    %564 = vset.pattern.permute.xlu0 1
    %565 = vperm.xlu0 %564, %v78
    %v566 = vpop.permute.xlu0 %565
    %568 = vset.pattern.permute.xlu0 1
    %569 = vperm.xlu0 %568, %v79
    %v570 = vpop.permute.xlu0 %569
    %572 = vset.pattern.permute.xlu0 1
    %573 = vperm.xlu0 %572, %v80
    %v574 = vpop.permute.xlu0 %573
    %576 = vset.pattern.permute.xlu0 1
    %577 = vperm.xlu0 %576, %v81
    %v578 = vpop.permute.xlu0 %577
    %580 = vset.pattern.permute.xlu0 1
    %581 = vperm.xlu0 %580, %v82
    %v582 = vpop.permute.xlu0 %581
    %584 = vset.pattern.permute.xlu0 1
    %585 = vperm.xlu0 %584, %v83
    %v586 = vpop.permute.xlu0 %585
    %588 = vset.pattern.permute.xlu0 1
    %589 = vperm.xlu0 %588, %v84
    %v590 = vpop.permute.xlu0 %589
    %592 = vset.pattern.permute.xlu0 1
    %593 = vperm.xlu0 %592, %v85
    %v594 = vpop.permute.xlu0 %593
    %596 = vset.pattern.permute.xlu0 1
    %597 = vperm.xlu0 %596, %v86
    %v598 = vpop.permute.xlu0 %597
    %600 = vset.pattern.permute.xlu0 1
    %601 = vperm.xlu0 %600, %v87
    %v602 = vpop.permute.xlu0 %601
    %v604 = vlaneseq
    %v605 = vshrl.u32 %v604, 7
    %v606 = vsub.s32 1, %v605
    %v607 = vrot.slane %v23, %v606
    %v608 = vmul.f32 %v478, %v607
    %v609 = vmul.f32 %v482, %v607
    %v610 = vmul.f32 %v486, %v607
    %v611 = vmul.f32 %v490, %v607
    %v612 = vmul.f32 %v494, %v607
    %v613 = vmul.f32 %v498, %v607
    %v614 = vmul.f32 %v502, %v607
    %v615 = vmul.f32 %v506, %v607
    %v616 = vmul.f32 %v510, %v607
    %v617 = vmul.f32 %v514, %v607
    %v618 = vmul.f32 %v518, %v607
    %v619 = vmul.f32 %v522, %v607
    %v620 = vmul.f32 %v526, %v607
    %v621 = vmul.f32 %v530, %v607
    %v622 = vmul.f32 %v534, %v607
    %v623 = vmul.f32 %v538, %v607
    %v624 = vmul.f32 %v542, %v607
    %v625 = vmul.f32 %v546, %v607
    %v626 = vmul.f32 %v550, %v607
    %v627 = vmul.f32 %v554, %v607
    %v628 = vmul.f32 %v558, %v607
    %v629 = vmul.f32 %v562, %v607
    %v630 = vmul.f32 %v566, %v607
    %v631 = vmul.f32 %v570, %v607
    %v632 = vmul.f32 %v574, %v607
    %v633 = vmul.f32 %v578, %v607
    %v634 = vmul.f32 %v582, %v607
    %v635 = vmul.f32 %v586, %v607
    %v636 = vmul.f32 %v590, %v607
    %v637 = vmul.f32 %v594, %v607
    %v638 = vmul.f32 %v598, %v607
    %v639 = vmul.f32 %v602, %v607
    %v640 = vadd.f32 %v444, %v608
    %v641 = vadd.f32 %v445, %v609
    %v642 = vadd.f32 %v446, %v610
    %v643 = vadd.f32 %v447, %v611
    %v644 = vadd.f32 %v448, %v612
    %v645 = vadd.f32 %v449, %v613
    %v646 = vadd.f32 %v450, %v614
    %v647 = vadd.f32 %v451, %v615
    %v648 = vadd.f32 %v452, %v616
    %v649 = vadd.f32 %v453, %v617
    %v650 = vadd.f32 %v454, %v618
    %v651 = vadd.f32 %v455, %v619
    %v652 = vadd.f32 %v456, %v620
    %v653 = vadd.f32 %v457, %v621
    %v654 = vadd.f32 %v458, %v622
    %v655 = vadd.f32 %v459, %v623
    %v656 = vadd.f32 %v460, %v624
    %v657 = vadd.f32 %v461, %v625
    %v658 = vadd.f32 %v462, %v626
    %v659 = vadd.f32 %v463, %v627
    %v660 = vadd.f32 %v464, %v628
    %v661 = vadd.f32 %v465, %v629
    %v662 = vadd.f32 %v466, %v630
    %v663 = vadd.f32 %v467, %v631
    %v664 = vadd.f32 %v468, %v632
    %v665 = vadd.f32 %v469, %v633
    %v666 = vadd.f32 %v470, %v634
    %v667 = vadd.f32 %v471, %v635
    %v668 = vadd.f32 %v472, %v636
    %v669 = vadd.f32 %v473, %v637
    %v670 = vadd.f32 %v474, %v638
    %v671 = vadd.f32 %v475, %v639
    %672 = vset.pattern.permute.xlu0 2
    %673 = vperm.xlu0 %672, %v56
    %v674 = vpop.permute.xlu0 %673
    %676 = vset.pattern.permute.xlu0 2
    %677 = vperm.xlu0 %676, %v57
    %v678 = vpop.permute.xlu0 %677
    %680 = vset.pattern.permute.xlu0 2
    %681 = vperm.xlu0 %680, %v58
    %v682 = vpop.permute.xlu0 %681
    %684 = vset.pattern.permute.xlu0 2
    %685 = vperm.xlu0 %684, %v59
    %v686 = vpop.permute.xlu0 %685
    %688 = vset.pattern.permute.xlu0 2
    %689 = vperm.xlu0 %688, %v60
    %v690 = vpop.permute.xlu0 %689
    %692 = vset.pattern.permute.xlu0 2
    %693 = vperm.xlu0 %692, %v61
    %v694 = vpop.permute.xlu0 %693
    %696 = vset.pattern.permute.xlu0 2
    %697 = vperm.xlu0 %696, %v62
    %v698 = vpop.permute.xlu0 %697
    %700 = vset.pattern.permute.xlu0 2
    %701 = vperm.xlu0 %700, %v63
    %v702 = vpop.permute.xlu0 %701
    %704 = vset.pattern.permute.xlu0 2
    %705 = vperm.xlu0 %704, %v64
    %v706 = vpop.permute.xlu0 %705
    %708 = vset.pattern.permute.xlu0 2
    %709 = vperm.xlu0 %708, %v65
    %v710 = vpop.permute.xlu0 %709
    %712 = vset.pattern.permute.xlu0 2
    %713 = vperm.xlu0 %712, %v66
    %v714 = vpop.permute.xlu0 %713
    %716 = vset.pattern.permute.xlu0 2
    %717 = vperm.xlu0 %716, %v67
    %v718 = vpop.permute.xlu0 %717
    %720 = vset.pattern.permute.xlu0 2
    %721 = vperm.xlu0 %720, %v68
    %v722 = vpop.permute.xlu0 %721
    %724 = vset.pattern.permute.xlu0 2
    %725 = vperm.xlu0 %724, %v69
    %v726 = vpop.permute.xlu0 %725
    %728 = vset.pattern.permute.xlu0 2
    %729 = vperm.xlu0 %728, %v70
    %v730 = vpop.permute.xlu0 %729
    %732 = vset.pattern.permute.xlu0 2
    %733 = vperm.xlu0 %732, %v71
    %v734 = vpop.permute.xlu0 %733
    %736 = vset.pattern.permute.xlu0 2
    %737 = vperm.xlu0 %736, %v72
    %v738 = vpop.permute.xlu0 %737
    %740 = vset.pattern.permute.xlu0 2
    %741 = vperm.xlu0 %740, %v73
    %v742 = vpop.permute.xlu0 %741
    %744 = vset.pattern.permute.xlu0 2
    %745 = vperm.xlu0 %744, %v74
    %v746 = vpop.permute.xlu0 %745
    %748 = vset.pattern.permute.xlu0 2
    %749 = vperm.xlu0 %748, %v75
    %v750 = vpop.permute.xlu0 %749
    %752 = vset.pattern.permute.xlu0 2
    %753 = vperm.xlu0 %752, %v76
    %v754 = vpop.permute.xlu0 %753
    %756 = vset.pattern.permute.xlu0 2
    %757 = vperm.xlu0 %756, %v77
    %v758 = vpop.permute.xlu0 %757
    %760 = vset.pattern.permute.xlu0 2
    %761 = vperm.xlu0 %760, %v78
    %v762 = vpop.permute.xlu0 %761
    %764 = vset.pattern.permute.xlu0 2
    %765 = vperm.xlu0 %764, %v79
    %v766 = vpop.permute.xlu0 %765
    %768 = vset.pattern.permute.xlu0 2
    %769 = vperm.xlu0 %768, %v80
    %v770 = vpop.permute.xlu0 %769
    %772 = vset.pattern.permute.xlu0 2
    %773 = vperm.xlu0 %772, %v81
    %v774 = vpop.permute.xlu0 %773
    %776 = vset.pattern.permute.xlu0 2
    %777 = vperm.xlu0 %776, %v82
    %v778 = vpop.permute.xlu0 %777
    %780 = vset.pattern.permute.xlu0 2
    %781 = vperm.xlu0 %780, %v83
    %v782 = vpop.permute.xlu0 %781
    %784 = vset.pattern.permute.xlu0 2
    %785 = vperm.xlu0 %784, %v84
    %v786 = vpop.permute.xlu0 %785
    %788 = vset.pattern.permute.xlu0 2
    %789 = vperm.xlu0 %788, %v85
    %v790 = vpop.permute.xlu0 %789
    %792 = vset.pattern.permute.xlu0 2
    %793 = vperm.xlu0 %792, %v86
    %v794 = vpop.permute.xlu0 %793
    %796 = vset.pattern.permute.xlu0 2
    %797 = vperm.xlu0 %796, %v87
    %v798 = vpop.permute.xlu0 %797
    %v800 = vlaneseq
    %v801 = vshrl.u32 %v800, 7
    %v802 = vsub.s32 2, %v801
    %v803 = vrot.slane %v23, %v802
    %v804 = vmul.f32 %v674, %v803
    %v805 = vmul.f32 %v678, %v803
    %v806 = vmul.f32 %v682, %v803
    %v807 = vmul.f32 %v686, %v803
    %v808 = vmul.f32 %v690, %v803
    %v809 = vmul.f32 %v694, %v803
    %v810 = vmul.f32 %v698, %v803
    %v811 = vmul.f32 %v702, %v803
    %v812 = vmul.f32 %v706, %v803
    %v813 = vmul.f32 %v710, %v803
    %v814 = vmul.f32 %v714, %v803
    %v815 = vmul.f32 %v718, %v803
    %v816 = vmul.f32 %v722, %v803
    %v817 = vmul.f32 %v726, %v803
    %v818 = vmul.f32 %v730, %v803
    %v819 = vmul.f32 %v734, %v803
    %v820 = vmul.f32 %v738, %v803
    %v821 = vmul.f32 %v742, %v803
    %v822 = vmul.f32 %v746, %v803
    %v823 = vmul.f32 %v750, %v803
    %v824 = vmul.f32 %v754, %v803
    %v825 = vmul.f32 %v758, %v803
    %v826 = vmul.f32 %v762, %v803
    %v827 = vmul.f32 %v766, %v803
    %v828 = vmul.f32 %v770, %v803
    %v829 = vmul.f32 %v774, %v803
    %v830 = vmul.f32 %v778, %v803
    %v831 = vmul.f32 %v782, %v803
    %v832 = vmul.f32 %v786, %v803
    %v833 = vmul.f32 %v790, %v803
    %v834 = vmul.f32 %v794, %v803
    %v835 = vmul.f32 %v798, %v803
    %v836 = vadd.f32 %v640, %v804
    %v837 = vadd.f32 %v641, %v805
    %v838 = vadd.f32 %v642, %v806
    %v839 = vadd.f32 %v643, %v807
    %v840 = vadd.f32 %v644, %v808
    %v841 = vadd.f32 %v645, %v809
    %v842 = vadd.f32 %v646, %v810
    %v843 = vadd.f32 %v647, %v811
    %v844 = vadd.f32 %v648, %v812
    %v845 = vadd.f32 %v649, %v813
    %v846 = vadd.f32 %v650, %v814
    %v847 = vadd.f32 %v651, %v815
    %v848 = vadd.f32 %v652, %v816
    %v849 = vadd.f32 %v653, %v817
    %v850 = vadd.f32 %v654, %v818
    %v851 = vadd.f32 %v655, %v819
    %v852 = vadd.f32 %v656, %v820
    %v853 = vadd.f32 %v657, %v821
    %v854 = vadd.f32 %v658, %v822
    %v855 = vadd.f32 %v659, %v823
    %v856 = vadd.f32 %v660, %v824
    %v857 = vadd.f32 %v661, %v825
    %v858 = vadd.f32 %v662, %v826
    %v859 = vadd.f32 %v663, %v827
    %v860 = vadd.f32 %v664, %v828
    %v861 = vadd.f32 %v665, %v829
    %v862 = vadd.f32 %v666, %v830
    %v863 = vadd.f32 %v667, %v831
    %v864 = vadd.f32 %v668, %v832
    %v865 = vadd.f32 %v669, %v833
    %v866 = vadd.f32 %v670, %v834
    %v867 = vadd.f32 %v671, %v835
    %868 = vset.pattern.permute.xlu0 3
    %869 = vperm.xlu0 %868, %v56
    %v870 = vpop.permute.xlu0 %869
    %872 = vset.pattern.permute.xlu0 3
    %873 = vperm.xlu0 %872, %v57
    %v874 = vpop.permute.xlu0 %873
    %876 = vset.pattern.permute.xlu0 3
    %877 = vperm.xlu0 %876, %v58
    %v878 = vpop.permute.xlu0 %877
    %880 = vset.pattern.permute.xlu0 3
    %881 = vperm.xlu0 %880, %v59
    %v882 = vpop.permute.xlu0 %881
    %884 = vset.pattern.permute.xlu0 3
    %885 = vperm.xlu0 %884, %v60
    %v886 = vpop.permute.xlu0 %885
    %888 = vset.pattern.permute.xlu0 3
    %889 = vperm.xlu0 %888, %v61
    %v890 = vpop.permute.xlu0 %889
    %892 = vset.pattern.permute.xlu0 3
    %893 = vperm.xlu0 %892, %v62
    %v894 = vpop.permute.xlu0 %893
    %896 = vset.pattern.permute.xlu0 3
    %897 = vperm.xlu0 %896, %v63
    %v898 = vpop.permute.xlu0 %897
    %900 = vset.pattern.permute.xlu0 3
    %901 = vperm.xlu0 %900, %v64
    %v902 = vpop.permute.xlu0 %901
    %904 = vset.pattern.permute.xlu0 3
    %905 = vperm.xlu0 %904, %v65
    %v906 = vpop.permute.xlu0 %905
    %908 = vset.pattern.permute.xlu0 3
    %909 = vperm.xlu0 %908, %v66
    %v910 = vpop.permute.xlu0 %909
    %912 = vset.pattern.permute.xlu0 3
    %913 = vperm.xlu0 %912, %v67
    %v914 = vpop.permute.xlu0 %913
    %916 = vset.pattern.permute.xlu0 3
    %917 = vperm.xlu0 %916, %v68
    %v918 = vpop.permute.xlu0 %917
    %920 = vset.pattern.permute.xlu0 3
    %921 = vperm.xlu0 %920, %v69
    %v922 = vpop.permute.xlu0 %921
    %924 = vset.pattern.permute.xlu0 3
    %925 = vperm.xlu0 %924, %v70
    %v926 = vpop.permute.xlu0 %925
    %928 = vset.pattern.permute.xlu0 3
    %929 = vperm.xlu0 %928, %v71
    %v930 = vpop.permute.xlu0 %929
    %932 = vset.pattern.permute.xlu0 3
    %933 = vperm.xlu0 %932, %v72
    %v934 = vpop.permute.xlu0 %933
    %936 = vset.pattern.permute.xlu0 3
    %937 = vperm.xlu0 %936, %v73
    %v938 = vpop.permute.xlu0 %937
    %940 = vset.pattern.permute.xlu0 3
    %941 = vperm.xlu0 %940, %v74
    %v942 = vpop.permute.xlu0 %941
    %944 = vset.pattern.permute.xlu0 3
    %945 = vperm.xlu0 %944, %v75
    %v946 = vpop.permute.xlu0 %945
    %948 = vset.pattern.permute.xlu0 3
    %949 = vperm.xlu0 %948, %v76
    %v950 = vpop.permute.xlu0 %949
    %952 = vset.pattern.permute.xlu0 3
    %953 = vperm.xlu0 %952, %v77
    %v954 = vpop.permute.xlu0 %953
    %956 = vset.pattern.permute.xlu0 3
    %957 = vperm.xlu0 %956, %v78
    %v958 = vpop.permute.xlu0 %957
    %960 = vset.pattern.permute.xlu0 3
    %961 = vperm.xlu0 %960, %v79
    %v962 = vpop.permute.xlu0 %961
    %964 = vset.pattern.permute.xlu0 3
    %965 = vperm.xlu0 %964, %v80
    %v966 = vpop.permute.xlu0 %965
    %968 = vset.pattern.permute.xlu0 3
    %969 = vperm.xlu0 %968, %v81
    %v970 = vpop.permute.xlu0 %969
    %972 = vset.pattern.permute.xlu0 3
    %973 = vperm.xlu0 %972, %v82
    %v974 = vpop.permute.xlu0 %973
    %976 = vset.pattern.permute.xlu0 3
    %977 = vperm.xlu0 %976, %v83
    %v978 = vpop.permute.xlu0 %977
    %980 = vset.pattern.permute.xlu0 3
    %981 = vperm.xlu0 %980, %v84
    %v982 = vpop.permute.xlu0 %981
    %984 = vset.pattern.permute.xlu0 3
    %985 = vperm.xlu0 %984, %v85
    %v986 = vpop.permute.xlu0 %985
    %988 = vset.pattern.permute.xlu0 3
    %989 = vperm.xlu0 %988, %v86
    %v990 = vpop.permute.xlu0 %989
    %992 = vset.pattern.permute.xlu0 3
    %993 = vperm.xlu0 %992, %v87
    %v994 = vpop.permute.xlu0 %993
    %v996 = vlaneseq
    %v997 = vshrl.u32 %v996, 7
    %v998 = vsub.s32 3, %v997
    %v999 = vrot.slane %v23, %v998
    %v1000 = vmul.f32 %v870, %v999
    %v1001 = vmul.f32 %v874, %v999
    %v1002 = vmul.f32 %v878, %v999
    %v1003 = vmul.f32 %v882, %v999
    %v1004 = vmul.f32 %v886, %v999
    %v1005 = vmul.f32 %v890, %v999
    %v1006 = vmul.f32 %v894, %v999
    %v1007 = vmul.f32 %v898, %v999
    %v1008 = vmul.f32 %v902, %v999
    %v1009 = vmul.f32 %v906, %v999
    %v1010 = vmul.f32 %v910, %v999
    %v1011 = vmul.f32 %v914, %v999
    %v1012 = vmul.f32 %v918, %v999
    %v1013 = vmul.f32 %v922, %v999
    %v1014 = vmul.f32 %v926, %v999
    %v1015 = vmul.f32 %v930, %v999
    %v1016 = vmul.f32 %v934, %v999
    %v1017 = vmul.f32 %v938, %v999
    %v1018 = vmul.f32 %v942, %v999
    %v1019 = vmul.f32 %v946, %v999
    %v1020 = vmul.f32 %v950, %v999
    %v1021 = vmul.f32 %v954, %v999
    %v1022 = vmul.f32 %v958, %v999
    %v1023 = vmul.f32 %v962, %v999
    %v1024 = vmul.f32 %v966, %v999
    %v1025 = vmul.f32 %v970, %v999
    %v1026 = vmul.f32 %v974, %v999
    %v1027 = vmul.f32 %v978, %v999
    %v1028 = vmul.f32 %v982, %v999
    %v1029 = vmul.f32 %v986, %v999
    %v1030 = vmul.f32 %v990, %v999
    %v1031 = vmul.f32 %v994, %v999
    %v1032 = vadd.f32 %v836, %v1000
    %v1033 = vadd.f32 %v837, %v1001
    %v1034 = vadd.f32 %v838, %v1002
    %v1035 = vadd.f32 %v839, %v1003
    %v1036 = vadd.f32 %v840, %v1004
    %v1037 = vadd.f32 %v841, %v1005
    %v1038 = vadd.f32 %v842, %v1006
    %v1039 = vadd.f32 %v843, %v1007
    %v1040 = vadd.f32 %v844, %v1008
    %v1041 = vadd.f32 %v845, %v1009
    %v1042 = vadd.f32 %v846, %v1010
    %v1043 = vadd.f32 %v847, %v1011
    %v1044 = vadd.f32 %v848, %v1012
    %v1045 = vadd.f32 %v849, %v1013
    %v1046 = vadd.f32 %v850, %v1014
    %v1047 = vadd.f32 %v851, %v1015
    %v1048 = vadd.f32 %v852, %v1016
    %v1049 = vadd.f32 %v853, %v1017
    %v1050 = vadd.f32 %v854, %v1018
    %v1051 = vadd.f32 %v855, %v1019
    %v1052 = vadd.f32 %v856, %v1020
    %v1053 = vadd.f32 %v857, %v1021
    %v1054 = vadd.f32 %v858, %v1022
    %v1055 = vadd.f32 %v859, %v1023
    %v1056 = vadd.f32 %v860, %v1024
    %v1057 = vadd.f32 %v861, %v1025
    %v1058 = vadd.f32 %v862, %v1026
    %v1059 = vadd.f32 %v863, %v1027
    %v1060 = vadd.f32 %v864, %v1028
    %v1061 = vadd.f32 %v865, %v1029
    %v1062 = vadd.f32 %v866, %v1030
    %v1063 = vadd.f32 %v867, %v1031
    %1064 = vset.pattern.permute.xlu0 4
    %1065 = vperm.xlu0 %1064, %v56
    %v1066 = vpop.permute.xlu0 %1065
    %1068 = vset.pattern.permute.xlu0 4
    %1069 = vperm.xlu0 %1068, %v57
    %v1070 = vpop.permute.xlu0 %1069
    %1072 = vset.pattern.permute.xlu0 4
    %1073 = vperm.xlu0 %1072, %v58
    %v1074 = vpop.permute.xlu0 %1073
    %1076 = vset.pattern.permute.xlu0 4
    %1077 = vperm.xlu0 %1076, %v59
    %v1078 = vpop.permute.xlu0 %1077
    %1080 = vset.pattern.permute.xlu0 4
    %1081 = vperm.xlu0 %1080, %v60
    %v1082 = vpop.permute.xlu0 %1081
    %1084 = vset.pattern.permute.xlu0 4
    %1085 = vperm.xlu0 %1084, %v61
    %v1086 = vpop.permute.xlu0 %1085
    %1088 = vset.pattern.permute.xlu0 4
    %1089 = vperm.xlu0 %1088, %v62
    %v1090 = vpop.permute.xlu0 %1089
    %1092 = vset.pattern.permute.xlu0 4
    %1093 = vperm.xlu0 %1092, %v63
    %v1094 = vpop.permute.xlu0 %1093
    %1096 = vset.pattern.permute.xlu0 4
    %1097 = vperm.xlu0 %1096, %v64
    %v1098 = vpop.permute.xlu0 %1097
    %1100 = vset.pattern.permute.xlu0 4
    %1101 = vperm.xlu0 %1100, %v65
    %v1102 = vpop.permute.xlu0 %1101
    %1104 = vset.pattern.permute.xlu0 4
    %1105 = vperm.xlu0 %1104, %v66
    %v1106 = vpop.permute.xlu0 %1105
    %1108 = vset.pattern.permute.xlu0 4
    %1109 = vperm.xlu0 %1108, %v67
    %v1110 = vpop.permute.xlu0 %1109
    %1112 = vset.pattern.permute.xlu0 4
    %1113 = vperm.xlu0 %1112, %v68
    %v1114 = vpop.permute.xlu0 %1113
    %1116 = vset.pattern.permute.xlu0 4
    %1117 = vperm.xlu0 %1116, %v69
    %v1118 = vpop.permute.xlu0 %1117
    %1120 = vset.pattern.permute.xlu0 4
    %1121 = vperm.xlu0 %1120, %v70
    %v1122 = vpop.permute.xlu0 %1121
    %1124 = vset.pattern.permute.xlu0 4
    %1125 = vperm.xlu0 %1124, %v71
    %v1126 = vpop.permute.xlu0 %1125
    %1128 = vset.pattern.permute.xlu0 4
    %1129 = vperm.xlu0 %1128, %v72
    %v1130 = vpop.permute.xlu0 %1129
    %1132 = vset.pattern.permute.xlu0 4
    %1133 = vperm.xlu0 %1132, %v73
    %v1134 = vpop.permute.xlu0 %1133
    %1136 = vset.pattern.permute.xlu0 4
    %1137 = vperm.xlu0 %1136, %v74
    %v1138 = vpop.permute.xlu0 %1137
    %1140 = vset.pattern.permute.xlu0 4
    %1141 = vperm.xlu0 %1140, %v75
    %v1142 = vpop.permute.xlu0 %1141
    %1144 = vset.pattern.permute.xlu0 4
    %1145 = vperm.xlu0 %1144, %v76
    %v1146 = vpop.permute.xlu0 %1145
    %1148 = vset.pattern.permute.xlu0 4
    %1149 = vperm.xlu0 %1148, %v77
    %v1150 = vpop.permute.xlu0 %1149
    %1152 = vset.pattern.permute.xlu0 4
    %1153 = vperm.xlu0 %1152, %v78
    %v1154 = vpop.permute.xlu0 %1153
    %1156 = vset.pattern.permute.xlu0 4
    %1157 = vperm.xlu0 %1156, %v79
    %v1158 = vpop.permute.xlu0 %1157
    %1160 = vset.pattern.permute.xlu0 4
    %1161 = vperm.xlu0 %1160, %v80
    %v1162 = vpop.permute.xlu0 %1161
    %1164 = vset.pattern.permute.xlu0 4
    %1165 = vperm.xlu0 %1164, %v81
    %v1166 = vpop.permute.xlu0 %1165
    %1168 = vset.pattern.permute.xlu0 4
    %1169 = vperm.xlu0 %1168, %v82
    %v1170 = vpop.permute.xlu0 %1169
    %1172 = vset.pattern.permute.xlu0 4
    %1173 = vperm.xlu0 %1172, %v83
    %v1174 = vpop.permute.xlu0 %1173
    %1176 = vset.pattern.permute.xlu0 4
    %1177 = vperm.xlu0 %1176, %v84
    %v1178 = vpop.permute.xlu0 %1177
    %1180 = vset.pattern.permute.xlu0 4
    %1181 = vperm.xlu0 %1180, %v85
    %v1182 = vpop.permute.xlu0 %1181
    %1184 = vset.pattern.permute.xlu0 4
    %1185 = vperm.xlu0 %1184, %v86
    %v1186 = vpop.permute.xlu0 %1185
    %1188 = vset.pattern.permute.xlu0 4
    %1189 = vperm.xlu0 %1188, %v87
    %v1190 = vpop.permute.xlu0 %1189
    %v1192 = vlaneseq
    %v1193 = vshrl.u32 %v1192, 7
    %v1194 = vsub.s32 4, %v1193
    %v1195 = vrot.slane %v23, %v1194
    %v1196 = vmul.f32 %v1066, %v1195
    %v1197 = vmul.f32 %v1070, %v1195
    %v1198 = vmul.f32 %v1074, %v1195
    %v1199 = vmul.f32 %v1078, %v1195
    %v1200 = vmul.f32 %v1082, %v1195
    %v1201 = vmul.f32 %v1086, %v1195
    %v1202 = vmul.f32 %v1090, %v1195
    %v1203 = vmul.f32 %v1094, %v1195
    %v1204 = vmul.f32 %v1098, %v1195
    %v1205 = vmul.f32 %v1102, %v1195
    %v1206 = vmul.f32 %v1106, %v1195
    %v1207 = vmul.f32 %v1110, %v1195
    %v1208 = vmul.f32 %v1114, %v1195
    %v1209 = vmul.f32 %v1118, %v1195
    %v1210 = vmul.f32 %v1122, %v1195
    %v1211 = vmul.f32 %v1126, %v1195
    %v1212 = vmul.f32 %v1130, %v1195
    %v1213 = vmul.f32 %v1134, %v1195
    %v1214 = vmul.f32 %v1138, %v1195
    %v1215 = vmul.f32 %v1142, %v1195
    %v1216 = vmul.f32 %v1146, %v1195
    %v1217 = vmul.f32 %v1150, %v1195
    %v1218 = vmul.f32 %v1154, %v1195
    %v1219 = vmul.f32 %v1158, %v1195
    %v1220 = vmul.f32 %v1162, %v1195
    %v1221 = vmul.f32 %v1166, %v1195
    %v1222 = vmul.f32 %v1170, %v1195
    %v1223 = vmul.f32 %v1174, %v1195
    %v1224 = vmul.f32 %v1178, %v1195
    %v1225 = vmul.f32 %v1182, %v1195
    %v1226 = vmul.f32 %v1186, %v1195
    %v1227 = vmul.f32 %v1190, %v1195
    %v1228 = vadd.f32 %v1032, %v1196
    %v1229 = vadd.f32 %v1033, %v1197
    %v1230 = vadd.f32 %v1034, %v1198
    %v1231 = vadd.f32 %v1035, %v1199
    %v1232 = vadd.f32 %v1036, %v1200
    %v1233 = vadd.f32 %v1037, %v1201
    %v1234 = vadd.f32 %v1038, %v1202
    %v1235 = vadd.f32 %v1039, %v1203
    %v1236 = vadd.f32 %v1040, %v1204
    %v1237 = vadd.f32 %v1041, %v1205
    %v1238 = vadd.f32 %v1042, %v1206
    %v1239 = vadd.f32 %v1043, %v1207
    %v1240 = vadd.f32 %v1044, %v1208
    %v1241 = vadd.f32 %v1045, %v1209
    %v1242 = vadd.f32 %v1046, %v1210
    %v1243 = vadd.f32 %v1047, %v1211
    %v1244 = vadd.f32 %v1048, %v1212
    %v1245 = vadd.f32 %v1049, %v1213
    %v1246 = vadd.f32 %v1050, %v1214
    %v1247 = vadd.f32 %v1051, %v1215
    %v1248 = vadd.f32 %v1052, %v1216
    %v1249 = vadd.f32 %v1053, %v1217
    %v1250 = vadd.f32 %v1054, %v1218
    %v1251 = vadd.f32 %v1055, %v1219
    %v1252 = vadd.f32 %v1056, %v1220
    %v1253 = vadd.f32 %v1057, %v1221
    %v1254 = vadd.f32 %v1058, %v1222
    %v1255 = vadd.f32 %v1059, %v1223
    %v1256 = vadd.f32 %v1060, %v1224
    %v1257 = vadd.f32 %v1061, %v1225
    %v1258 = vadd.f32 %v1062, %v1226
    %v1259 = vadd.f32 %v1063, %v1227
    %1260 = vset.pattern.permute.xlu0 5
    %1261 = vperm.xlu0 %1260, %v56
    %v1262 = vpop.permute.xlu0 %1261
    %1264 = vset.pattern.permute.xlu0 5
    %1265 = vperm.xlu0 %1264, %v57
    %v1266 = vpop.permute.xlu0 %1265
    %1268 = vset.pattern.permute.xlu0 5
    %1269 = vperm.xlu0 %1268, %v58
    %v1270 = vpop.permute.xlu0 %1269
    %1272 = vset.pattern.permute.xlu0 5
    %1273 = vperm.xlu0 %1272, %v59
    %v1274 = vpop.permute.xlu0 %1273
    %1276 = vset.pattern.permute.xlu0 5
    %1277 = vperm.xlu0 %1276, %v60
    %v1278 = vpop.permute.xlu0 %1277
    %1280 = vset.pattern.permute.xlu0 5
    %1281 = vperm.xlu0 %1280, %v61
    %v1282 = vpop.permute.xlu0 %1281
    %1284 = vset.pattern.permute.xlu0 5
    %1285 = vperm.xlu0 %1284, %v62
    %v1286 = vpop.permute.xlu0 %1285
    %1288 = vset.pattern.permute.xlu0 5
    %1289 = vperm.xlu0 %1288, %v63
    %v1290 = vpop.permute.xlu0 %1289
    %1292 = vset.pattern.permute.xlu0 5
    %1293 = vperm.xlu0 %1292, %v64
    %v1294 = vpop.permute.xlu0 %1293
    %1296 = vset.pattern.permute.xlu0 5
    %1297 = vperm.xlu0 %1296, %v65
    %v1298 = vpop.permute.xlu0 %1297
    %1300 = vset.pattern.permute.xlu0 5
    %1301 = vperm.xlu0 %1300, %v66
    %v1302 = vpop.permute.xlu0 %1301
    %1304 = vset.pattern.permute.xlu0 5
    %1305 = vperm.xlu0 %1304, %v67
    %v1306 = vpop.permute.xlu0 %1305
    %1308 = vset.pattern.permute.xlu0 5
    %1309 = vperm.xlu0 %1308, %v68
    %v1310 = vpop.permute.xlu0 %1309
    %1312 = vset.pattern.permute.xlu0 5
    %1313 = vperm.xlu0 %1312, %v69
    %v1314 = vpop.permute.xlu0 %1313
    %1316 = vset.pattern.permute.xlu0 5
    %1317 = vperm.xlu0 %1316, %v70
    %v1318 = vpop.permute.xlu0 %1317
    %1320 = vset.pattern.permute.xlu0 5
    %1321 = vperm.xlu0 %1320, %v71
    %v1322 = vpop.permute.xlu0 %1321
    %1324 = vset.pattern.permute.xlu0 5
    %1325 = vperm.xlu0 %1324, %v72
    %v1326 = vpop.permute.xlu0 %1325
    %1328 = vset.pattern.permute.xlu0 5
    %1329 = vperm.xlu0 %1328, %v73
    %v1330 = vpop.permute.xlu0 %1329
    %1332 = vset.pattern.permute.xlu0 5
    %1333 = vperm.xlu0 %1332, %v74
    %v1334 = vpop.permute.xlu0 %1333
    %1336 = vset.pattern.permute.xlu0 5
    %1337 = vperm.xlu0 %1336, %v75
    %v1338 = vpop.permute.xlu0 %1337
    %1340 = vset.pattern.permute.xlu0 5
    %1341 = vperm.xlu0 %1340, %v76
    %v1342 = vpop.permute.xlu0 %1341
    %1344 = vset.pattern.permute.xlu0 5
    %1345 = vperm.xlu0 %1344, %v77
    %v1346 = vpop.permute.xlu0 %1345
    %1348 = vset.pattern.permute.xlu0 5
    %1349 = vperm.xlu0 %1348, %v78
    %v1350 = vpop.permute.xlu0 %1349
    %1352 = vset.pattern.permute.xlu0 5
    %1353 = vperm.xlu0 %1352, %v79
    %v1354 = vpop.permute.xlu0 %1353
    %1356 = vset.pattern.permute.xlu0 5
    %1357 = vperm.xlu0 %1356, %v80
    %v1358 = vpop.permute.xlu0 %1357
    %1360 = vset.pattern.permute.xlu0 5
    %1361 = vperm.xlu0 %1360, %v81
    %v1362 = vpop.permute.xlu0 %1361
    %1364 = vset.pattern.permute.xlu0 5
    %1365 = vperm.xlu0 %1364, %v82
    %v1366 = vpop.permute.xlu0 %1365
    %1368 = vset.pattern.permute.xlu0 5
    %1369 = vperm.xlu0 %1368, %v83
    %v1370 = vpop.permute.xlu0 %1369
    %1372 = vset.pattern.permute.xlu0 5
    %1373 = vperm.xlu0 %1372, %v84
    %v1374 = vpop.permute.xlu0 %1373
    %1376 = vset.pattern.permute.xlu0 5
    %1377 = vperm.xlu0 %1376, %v85
    %v1378 = vpop.permute.xlu0 %1377
    %1380 = vset.pattern.permute.xlu0 5
    %1381 = vperm.xlu0 %1380, %v86
    %v1382 = vpop.permute.xlu0 %1381
    %1384 = vset.pattern.permute.xlu0 5
    %1385 = vperm.xlu0 %1384, %v87
    %v1386 = vpop.permute.xlu0 %1385
    %v1388 = vlaneseq
    %v1389 = vshrl.u32 %v1388, 7
    %v1390 = vsub.s32 5, %v1389
    %v1391 = vrot.slane %v23, %v1390
    %v1392 = vmul.f32 %v1262, %v1391
    %v1393 = vmul.f32 %v1266, %v1391
    %v1394 = vmul.f32 %v1270, %v1391
    %v1395 = vmul.f32 %v1274, %v1391
    %v1396 = vmul.f32 %v1278, %v1391
    %v1397 = vmul.f32 %v1282, %v1391
    %v1398 = vmul.f32 %v1286, %v1391
    %v1399 = vmul.f32 %v1290, %v1391
    %v1400 = vmul.f32 %v1294, %v1391
    %v1401 = vmul.f32 %v1298, %v1391
    %v1402 = vmul.f32 %v1302, %v1391
    %v1403 = vmul.f32 %v1306, %v1391
    %v1404 = vmul.f32 %v1310, %v1391
    %v1405 = vmul.f32 %v1314, %v1391
    %v1406 = vmul.f32 %v1318, %v1391
    %v1407 = vmul.f32 %v1322, %v1391
    %v1408 = vmul.f32 %v1326, %v1391
    %v1409 = vmul.f32 %v1330, %v1391
    %v1410 = vmul.f32 %v1334, %v1391
    %v1411 = vmul.f32 %v1338, %v1391
    %v1412 = vmul.f32 %v1342, %v1391
    %v1413 = vmul.f32 %v1346, %v1391
    %v1414 = vmul.f32 %v1350, %v1391
    %v1415 = vmul.f32 %v1354, %v1391
    %v1416 = vmul.f32 %v1358, %v1391
    %v1417 = vmul.f32 %v1362, %v1391
    %v1418 = vmul.f32 %v1366, %v1391
    %v1419 = vmul.f32 %v1370, %v1391
    %v1420 = vmul.f32 %v1374, %v1391
    %v1421 = vmul.f32 %v1378, %v1391
    %v1422 = vmul.f32 %v1382, %v1391
    %v1423 = vmul.f32 %v1386, %v1391
    %v1424 = vadd.f32 %v1228, %v1392
    %v1425 = vadd.f32 %v1229, %v1393
    %v1426 = vadd.f32 %v1230, %v1394
    %v1427 = vadd.f32 %v1231, %v1395
    %v1428 = vadd.f32 %v1232, %v1396
    %v1429 = vadd.f32 %v1233, %v1397
    %v1430 = vadd.f32 %v1234, %v1398
    %v1431 = vadd.f32 %v1235, %v1399
    %v1432 = vadd.f32 %v1236, %v1400
    %v1433 = vadd.f32 %v1237, %v1401
    %v1434 = vadd.f32 %v1238, %v1402
    %v1435 = vadd.f32 %v1239, %v1403
    %v1436 = vadd.f32 %v1240, %v1404
    %v1437 = vadd.f32 %v1241, %v1405
    %v1438 = vadd.f32 %v1242, %v1406
    %v1439 = vadd.f32 %v1243, %v1407
    %v1440 = vadd.f32 %v1244, %v1408
    %v1441 = vadd.f32 %v1245, %v1409
    %v1442 = vadd.f32 %v1246, %v1410
    %v1443 = vadd.f32 %v1247, %v1411
    %v1444 = vadd.f32 %v1248, %v1412
    %v1445 = vadd.f32 %v1249, %v1413
    %v1446 = vadd.f32 %v1250, %v1414
    %v1447 = vadd.f32 %v1251, %v1415
    %v1448 = vadd.f32 %v1252, %v1416
    %v1449 = vadd.f32 %v1253, %v1417
    %v1450 = vadd.f32 %v1254, %v1418
    %v1451 = vadd.f32 %v1255, %v1419
    %v1452 = vadd.f32 %v1256, %v1420
    %v1453 = vadd.f32 %v1257, %v1421
    %v1454 = vadd.f32 %v1258, %v1422
    %v1455 = vadd.f32 %v1259, %v1423
    %v1456 = vmax.f32 %v1424, 0.0
    %v1457 = vmax.f32 %v1425, 0.0
    %v1458 = vmax.f32 %v1426, 0.0
    %v1459 = vmax.f32 %v1427, 0.0
    %v1460 = vmax.f32 %v1428, 0.0
    %v1461 = vmax.f32 %v1429, 0.0
    %v1462 = vmax.f32 %v1430, 0.0
    %v1463 = vmax.f32 %v1431, 0.0
    %v1464 = vmax.f32 %v1432, 0.0
    %v1465 = vmax.f32 %v1433, 0.0
    %v1466 = vmax.f32 %v1434, 0.0
    %v1467 = vmax.f32 %v1435, 0.0
    %v1468 = vmax.f32 %v1436, 0.0
    %v1469 = vmax.f32 %v1437, 0.0
    %v1470 = vmax.f32 %v1438, 0.0
    %v1471 = vmax.f32 %v1439, 0.0
    %v1472 = vmax.f32 %v1440, 0.0
    %v1473 = vmax.f32 %v1441, 0.0
    %v1474 = vmax.f32 %v1442, 0.0
    %v1475 = vmax.f32 %v1443, 0.0
    %v1476 = vmax.f32 %v1444, 0.0
    %v1477 = vmax.f32 %v1445, 0.0
    %v1478 = vmax.f32 %v1446, 0.0
    %v1479 = vmax.f32 %v1447, 0.0
    %v1480 = vmax.f32 %v1448, 0.0
    %v1481 = vmax.f32 %v1449, 0.0
    %v1482 = vmax.f32 %v1450, 0.0
    %v1483 = vmax.f32 %v1451, 0.0
    %v1484 = vmax.f32 %v1452, 0.0
    %v1485 = vmax.f32 %v1453, 0.0
    %v1486 = vmax.f32 %v1454, 0.0
    %v1487 = vmax.f32 %v1455, 0.0
    %v1488 = vld [vmem:[%s3] sm:$0xff]
    %v1489 = vld [vmem:[%s3 + $0x8] sm:$0xff]
    %v1490 = vld [vmem:[%s3 + $0x10] sm:$0xff]
    %v1491 = vld [vmem:[%s3 + $0x18] sm:$0xff]
    %v1492 = vld [vmem:[%s3 + $0x20] sm:$0xff]
    %v1493 = vld [vmem:[%s3 + $0x28] sm:$0xff]
    %v1494 = vld [vmem:[%s3 + $0x30] sm:$0xff]
    %v1495 = vld [vmem:[%s3 + $0x38] sm:$0xff]
    %v1496 = vld [vmem:[%s3 + $0x40] sm:$0xff]
    %v1497 = vld [vmem:[%s3 + $0x48] sm:$0xff]
    %v1498 = vld [vmem:[%s3 + $0x50] sm:$0xff]
    %v1499 = vld [vmem:[%s3 + $0x58] sm:$0xff]
    %v1500 = vld [vmem:[%s3 + $0x60] sm:$0xff]
    %v1501 = vld [vmem:[%s3 + $0x68] sm:$0xff]
    %v1502 = vld [vmem:[%s3 + $0x70] sm:$0xff]
    %v1503 = vld [vmem:[%s3 + $0x78] sm:$0xff]
    %v1504 = vld [vmem:[%s3 + $0x80] sm:$0xff]
    %v1505 = vld [vmem:[%s3 + $0x88] sm:$0xff]
    %v1506 = vld [vmem:[%s3 + $0x90] sm:$0xff]
    %v1507 = vld [vmem:[%s3 + $0x98] sm:$0xff]
    %v1508 = vld [vmem:[%s3 + $0xa0] sm:$0xff]
    %v1509 = vld [vmem:[%s3 + $0xa8] sm:$0xff]
    %v1510 = vld [vmem:[%s3 + $0xb0] sm:$0xff]
    %v1511 = vld [vmem:[%s3 + $0xb8] sm:$0xff]
    %v1512 = vld [vmem:[%s3 + $0xc0] sm:$0xff]
    %v1513 = vld [vmem:[%s3 + $0xc8] sm:$0xff]
    %v1514 = vld [vmem:[%s3 + $0xd0] sm:$0xff]
    %v1515 = vld [vmem:[%s3 + $0xd8] sm:$0xff]
    %v1516 = vld [vmem:[%s3 + $0xe0] sm:$0xff]
    %v1517 = vld [vmem:[%s3 + $0xe8] sm:$0xff]
    %v1518 = vld [vmem:[%s3 + $0xf0] sm:$0xff]
    %v1519 = vld [vmem:[%s3 + $0xf8] sm:$0xff]
    %1521 = vset.pattern.permute.xlu0 0
    %1522 = vperm.xlu0 %1521, %v1488
    %v1523 = vpop.permute.xlu0 %1522
    %1526 = vset.pattern.permute.xlu0 0
    %1527 = vperm.xlu0 %1526, %v1489
    %v1528 = vpop.permute.xlu0 %1527
    %1531 = vset.pattern.permute.xlu0 0
    %1532 = vperm.xlu0 %1531, %v1490
    %v1533 = vpop.permute.xlu0 %1532
    %1536 = vset.pattern.permute.xlu0 0
    %1537 = vperm.xlu0 %1536, %v1491
    %v1538 = vpop.permute.xlu0 %1537
    %1541 = vset.pattern.permute.xlu0 0
    %1542 = vperm.xlu0 %1541, %v1492
    %v1543 = vpop.permute.xlu0 %1542
    %1546 = vset.pattern.permute.xlu0 0
    %1547 = vperm.xlu0 %1546, %v1493
    %v1548 = vpop.permute.xlu0 %1547
    %1551 = vset.pattern.permute.xlu0 0
    %1552 = vperm.xlu0 %1551, %v1494
    %v1553 = vpop.permute.xlu0 %1552
    %1556 = vset.pattern.permute.xlu0 0
    %1557 = vperm.xlu0 %1556, %v1495
    %v1558 = vpop.permute.xlu0 %1557
    %1561 = vset.pattern.permute.xlu0 0
    %1562 = vperm.xlu0 %1561, %v1496
    %v1563 = vpop.permute.xlu0 %1562
    %1566 = vset.pattern.permute.xlu0 0
    %1567 = vperm.xlu0 %1566, %v1497
    %v1568 = vpop.permute.xlu0 %1567
    %1571 = vset.pattern.permute.xlu0 0
    %1572 = vperm.xlu0 %1571, %v1498
    %v1573 = vpop.permute.xlu0 %1572
    %1576 = vset.pattern.permute.xlu0 0
    %1577 = vperm.xlu0 %1576, %v1499
    %v1578 = vpop.permute.xlu0 %1577
    %1581 = vset.pattern.permute.xlu0 0
    %1582 = vperm.xlu0 %1581, %v1500
    %v1583 = vpop.permute.xlu0 %1582
    %1586 = vset.pattern.permute.xlu0 0
    %1587 = vperm.xlu0 %1586, %v1501
    %v1588 = vpop.permute.xlu0 %1587
    %1591 = vset.pattern.permute.xlu0 0
    %1592 = vperm.xlu0 %1591, %v1502
    %v1593 = vpop.permute.xlu0 %1592
    %1596 = vset.pattern.permute.xlu0 0
    %1597 = vperm.xlu0 %1596, %v1503
    %v1598 = vpop.permute.xlu0 %1597
    %1601 = vset.pattern.permute.xlu0 0
    %1602 = vperm.xlu0 %1601, %v1504
    %v1603 = vpop.permute.xlu0 %1602
    %1606 = vset.pattern.permute.xlu0 0
    %1607 = vperm.xlu0 %1606, %v1505
    %v1608 = vpop.permute.xlu0 %1607
    %1611 = vset.pattern.permute.xlu0 0
    %1612 = vperm.xlu0 %1611, %v1506
    %v1613 = vpop.permute.xlu0 %1612
    %1616 = vset.pattern.permute.xlu0 0
    %1617 = vperm.xlu0 %1616, %v1507
    %v1618 = vpop.permute.xlu0 %1617
    %1621 = vset.pattern.permute.xlu0 0
    %1622 = vperm.xlu0 %1621, %v1508
    %v1623 = vpop.permute.xlu0 %1622
    %1626 = vset.pattern.permute.xlu0 0
    %1627 = vperm.xlu0 %1626, %v1509
    %v1628 = vpop.permute.xlu0 %1627
    %1631 = vset.pattern.permute.xlu0 0
    %1632 = vperm.xlu0 %1631, %v1510
    %v1633 = vpop.permute.xlu0 %1632
    %1636 = vset.pattern.permute.xlu0 0
    %1637 = vperm.xlu0 %1636, %v1511
    %v1638 = vpop.permute.xlu0 %1637
    %1641 = vset.pattern.permute.xlu0 0
    %1642 = vperm.xlu0 %1641, %v1512
    %v1643 = vpop.permute.xlu0 %1642
    %1646 = vset.pattern.permute.xlu0 0
    %1647 = vperm.xlu0 %1646, %v1513
    %v1648 = vpop.permute.xlu0 %1647
    %1651 = vset.pattern.permute.xlu0 0
    %1652 = vperm.xlu0 %1651, %v1514
    %v1653 = vpop.permute.xlu0 %1652
    %1656 = vset.pattern.permute.xlu0 0
    %1657 = vperm.xlu0 %1656, %v1515
    %v1658 = vpop.permute.xlu0 %1657
    %1661 = vset.pattern.permute.xlu0 0
    %1662 = vperm.xlu0 %1661, %v1516
    %v1663 = vpop.permute.xlu0 %1662
    %1666 = vset.pattern.permute.xlu0 0
    %1667 = vperm.xlu0 %1666, %v1517
    %v1668 = vpop.permute.xlu0 %1667
    %1671 = vset.pattern.permute.xlu0 0
    %1672 = vperm.xlu0 %1671, %v1518
    %v1673 = vpop.permute.xlu0 %1672
    %1676 = vset.pattern.permute.xlu0 0
    %1677 = vperm.xlu0 %1676, %v1519
    %v1678 = vpop.permute.xlu0 %1677
    %v1680 = vmul.f32 %v1456, %v1523
    %v1681 = vmul.f32 %v1457, %v1528
    %v1682 = vmul.f32 %v1458, %v1533
    %v1683 = vmul.f32 %v1459, %v1538
    %v1684 = vmul.f32 %v1460, %v1543
    %v1685 = vmul.f32 %v1461, %v1548
    %v1686 = vmul.f32 %v1462, %v1553
    %v1687 = vmul.f32 %v1463, %v1558
    %v1688 = vmul.f32 %v1464, %v1563
    %v1689 = vmul.f32 %v1465, %v1568
    %v1690 = vmul.f32 %v1466, %v1573
    %v1691 = vmul.f32 %v1467, %v1578
    %v1692 = vmul.f32 %v1468, %v1583
    %v1693 = vmul.f32 %v1469, %v1588
    %v1694 = vmul.f32 %v1470, %v1593
    %v1695 = vmul.f32 %v1471, %v1598
    %v1696 = vmul.f32 %v1472, %v1603
    %v1697 = vmul.f32 %v1473, %v1608
    %v1698 = vmul.f32 %v1474, %v1613
    %v1699 = vmul.f32 %v1475, %v1618
    %v1700 = vmul.f32 %v1476, %v1623
    %v1701 = vmul.f32 %v1477, %v1628
    %v1702 = vmul.f32 %v1478, %v1633
    %v1703 = vmul.f32 %v1479, %v1638
    %v1704 = vmul.f32 %v1480, %v1643
    %v1705 = vmul.f32 %v1481, %v1648
    %v1706 = vmul.f32 %v1482, %v1653
    %v1707 = vmul.f32 %v1483, %v1658
    %v1708 = vmul.f32 %v1484, %v1663
    %v1709 = vmul.f32 %v1485, %v1668
    %v1710 = vmul.f32 %v1486, %v1673
    %v1711 = vmul.f32 %v1487, %v1678
    %v1712 = vadd.f32 %v1680, %v1681
    %v1713 = vadd.f32 %v1712, %v1682
    %v1714 = vadd.f32 %v1713, %v1683
    %v1715 = vadd.f32 %v1714, %v1684
    %v1716 = vadd.f32 %v1715, %v1685
    %v1717 = vadd.f32 %v1716, %v1686
    %v1718 = vadd.f32 %v1717, %v1687
    %v1719 = vadd.f32 %v1718, %v1688
    %v1720 = vadd.f32 %v1719, %v1689
    %v1721 = vadd.f32 %v1720, %v1690
    %v1722 = vadd.f32 %v1721, %v1691
    %v1723 = vadd.f32 %v1722, %v1692
    %v1724 = vadd.f32 %v1723, %v1693
    %v1725 = vadd.f32 %v1724, %v1694
    %v1726 = vadd.f32 %v1725, %v1695
    %v1727 = vadd.f32 %v1726, %v1696
    %v1728 = vadd.f32 %v1727, %v1697
    %v1729 = vadd.f32 %v1728, %v1698
    %v1730 = vadd.f32 %v1729, %v1699
    %v1731 = vadd.f32 %v1730, %v1700
    %v1732 = vadd.f32 %v1731, %v1701
    %v1733 = vadd.f32 %v1732, %v1702
    %v1734 = vadd.f32 %v1733, %v1703
    %v1735 = vadd.f32 %v1734, %v1704
    %v1736 = vadd.f32 %v1735, %v1705
    %v1737 = vadd.f32 %v1736, %v1706
    %v1738 = vadd.f32 %v1737, %v1707
    %v1739 = vadd.f32 %v1738, %v1708
    %v1740 = vadd.f32 %v1739, %v1709
    %v1741 = vadd.f32 %v1740, %v1710
    %v1742 = vadd.f32 %v1741, %v1711
    %v1743 = vrot.slane %v1742, 4
    %v1744 = vadd.f32 %v1742, %v1743
    %v1745 = vrot.slane %v1744, 2
    %v1746 = vadd.f32 %v1744, %v1745
    %v1747 = vrot.slane %v1746, 1
    %v1748 = vadd.f32 %v1746, %v1747
    %v1749 = vstv %s22
    %v1750 = vadd.f32 %v1748, %v1749
    %1751 = vst [vmem:[#allocation3] sm:$0x1] %v1750
    // Predicated region
    $region22: #{tpu_custom_call.1} parent=1 // pred_check
      _
    $region23: #{tpu_custom_call.1} parent=1 // pred_check_branch
      %1753 = sbr.rel (0) target = $region25
    $region24: #{tpu_custom_call.1} parent=1 // pred_region
      %s1755 = ssub.s32 16, 16
      %1756 = vsyncadd [#allocation4], %s1755
      %s1758 = sshll.u32 [#allocation3], 4
      %s1759 = int_to_ptr.vmem [resolvable:$true] %s1758
      %1761 = dma.vmem_to_hbm [thread:$0]  %s1759, 16, %s5, [#allocation4]
    $region25: #{tpu_custom_call.1} parent=1 // pred_fallthru
      _
    // Predicated region
    $region26: #{tpu_custom_call.1} parent=1 // pred_check
      _
    $region27: #{tpu_custom_call.1} parent=1 // pred_check_branch
      %1763 = sbr.rel (0) target = $region29
    $region28: #{tpu_custom_call.1} parent=1 // pred_region
      %1764 = dma.done [#allocation4], 16
    $region29: #{tpu_custom_call.1} parent=1 // pred_fallthru
      _
    %1765 = vsyncpa [#allocation4], 1

</llo_original>
